<compile_context>
chip_gen: v7x
topology: tpu7x:2x2x1
jax: 0.10.0
libtpu: 0.0.40
codegen_flags: <defaults>
</compile_context>

<pallas_src>
import functools

import jax
import jax.numpy as jnp
from jax.experimental import pallas as pl
from jax.experimental.pallas import tpu as pltpu

P = 8  # logical rows packed per lane-dense row (8*d_model=256 lanes, 8*d_inp=32 lanes)


def _packed_linear_kernel(x_ref, w_ref, b_ref, o_ref):
    # x_ref: (TM, P*d_inp) f32, w_ref: (P*d_inp, P*d_model) resident,
    # b_ref: (1, P*d_model) resident, o_ref: (TM, P*d_model)
    acc = jnp.dot(x_ref[...], w_ref[...], preferred_element_type=jnp.float32)
    o_ref[...] = (acc + b_ref[...]).astype(o_ref.dtype)


def _round_up(x, m):
    return (x + m - 1) // m * m


@functools.partial(jax.jit, static_argnames=("tm_max",))
def time_feature_embedding(x, weight, bias, *, tm_max=512):
    """Equivalent to nn.Linear(d_inp, d_model)(x).

    x:      (B, L, d_inp)   float32
    weight: (d_model, d_inp)  (PyTorch nn.Linear layout)
    bias:   (d_model,)
    returns (B, L, d_model)
    """
    B, L, d_inp = x.shape
    d_model = weight.shape[0]
    M = B * L
    itemsize = jnp.dtype(x.dtype).itemsize

    # --- row packing / padding (all static shape math, free reshapes) -------
    m_packed = pl.cdiv(M, P)
    tm = min(tm_max, _round_up(m_packed, 8))      # packed rows per tile, mult of 8
    m_packed_pad = _round_up(m_packed, tm)        # grid divides evenly
    m_pad = m_packed_pad * P

    x2d = x.reshape(M, d_inp)
    x2d = jnp.pad(x2d, ((0, m_pad - M), (0, 0)))
    x_packed = x2d.reshape(m_packed_pad, P * d_inp)          # (M/P, 32) lane-packed

    # Block-diagonal weight: one (TM,32)@(32,256) matmul emits the packed,
    # lane-dense output layout directly.
    w_t = weight.T.astype(x.dtype)                            # (d_inp, d_model)
    w_big = jnp.kron(jnp.eye(P, dtype=w_t.dtype), w_t)        # (P*d_inp, P*d_model)
    b_big = jnp.tile(bias.astype(x.dtype), (P,)).reshape(1, P * d_model)

    kin = P * d_inp
    kout = P * d_model
    grid = (m_packed_pad // tm,)

    cost = pl.CostEstimate(
        flops=2 * m_packed_pad * kin * kout,
        transcendentals=0,
        bytes_accessed=(x_packed.size + w_big.size + b_big.size
                        + m_packed_pad * kout) * itemsize,
    )

    out_packed = pl.pallas_call(
        _packed_linear_kernel,
        out_shape=jax.ShapeDtypeStruct((m_packed_pad, kout), x.dtype),
        grid_spec=pltpu.PrefetchScalarGridSpec(
            num_scalar_prefetch=0,
            grid=grid,
            in_specs=[
                # x tile: streamed over the row grid (double-buffered by Pallas)
                pl.BlockSpec((tm, kin), lambda i: (i, 0)),
                # weight / bias: same block every step -> stay resident in VMEM
                pl.BlockSpec((kin, kout), lambda i: (0, 0)),
                pl.BlockSpec((1, kout), lambda i: (0, 0)),
            ],
            out_specs=pl.BlockSpec((tm, kout), lambda i: (i, 0)),
        ),
        compiler_params=pltpu.CompilerParams(
            # Independent row tiles -> shard across TensorCores on v7x.
            dimension_semantics=("parallel",),
        ),
        cost_estimate=cost,
    )(x_packed, w_big, b_big)

    out = out_packed.reshape(m_pad, d_model)[:M]
    return out.reshape(B, L, d_model)


if __name__ == "__main__":
    # CAT_TimeFeatureEmbedding(d_model=32, freq='h') -> d_inp = 4
    d_model = 32
    d_inp = 4          # freq_map['h']
    B, L = 2, 8

    key = jax.random.PRNGKey(0)
    kx, kw, kb = jax.random.split(key, 3)

    x = jax.random.normal(kx, (B, L, d_inp), dtype=jnp.float32)
    # Deterministic init mimicking nn.Linear's uniform(-1/sqrt(d_inp), 1/sqrt(d_inp))
    bound = 1.0 / (d_inp ** 0.5)
    weight = jax.random.uniform(kw, (d_model, d_inp), jnp.float32, -bound, bound)
    bias = jax.random.uniform(kb, (d_model,), jnp.float32, -bound, bound)

    out = time_feature_embedding(x, weight, bias)
    out = jax.block_until_ready(out)

    # Reference check against plain JAX
    ref = x @ weight.T + bias
    assert out.shape == (B, L, d_model)
    assert jnp.allclose(out, ref, atol=1e-5, rtol=1e-5)

    print("KERNEL_OK")
</pallas_src>

<mosaic_0001>
module attributes {stable_mosaic.version = 11 : i64} {
  func.func @_packed_linear_kernel(%arg0: i32, %arg1: memref<8x32xf32, #tpu.memory_space<vmem>>, %arg2: memref<32x256xf32, #tpu.memory_space<vmem>>, %arg3: memref<1x256xf32, #tpu.memory_space<vmem>>, %arg4: memref<8x256xf32, #tpu.memory_space<vmem>>) attributes {dimension_semantics = [#tpu.dimension_semantics<parallel>], iteration_bounds = array<i64: 1>, scalar_prefetch = 0 : i64, scratch_operands = 0 : i64, tpu.core_type = #tpu.core_type<tc>, window_params = [{transform_indices = @transform_0, window_bounds = array<i64: 8, 32>}, {pipeline_mode = #tpu.pipeline_mode<synchronous>, transform_indices = @transform_1, window_bounds = array<i64: 32, 256>}, {pipeline_mode = #tpu.pipeline_mode<synchronous>, transform_indices = @transform_2, window_bounds = array<i64: 1, 256>}, {transform_indices = @transform_3, window_bounds = array<i64: 8, 256>}]} {
    %c0 = arith.constant 0 : index
    %c0_0 = arith.constant 0 : index
    %0 = vector.load %arg1[%c0, %c0_0] : memref<8x32xf32, #tpu.memory_space<vmem>>, vector<8x32xf32>
    %c0_1 = arith.constant 0 : index
    %c0_2 = arith.constant 0 : index
    %1 = vector.load %arg2[%c0_1, %c0_2] : memref<32x256xf32, #tpu.memory_space<vmem>>, vector<32x256xf32>
    %cst = arith.constant dense<0.000000e+00> : vector<8x256xf32>
    %2 = tpu.matmul %0, %1, %cst {dimension_numbers = #tpu.dot_dimension_numbers<[1], [0], [0], [1], [0, 0, 1, 1], [], []>} : vector<8x32xf32>, vector<32x256xf32>, vector<8x256xf32> -> vector<8x256xf32>
    %c0_3 = arith.constant 0 : index
    %c0_4 = arith.constant 0 : index
    %3 = vector.load %arg3[%c0_3, %c0_4] : memref<1x256xf32, #tpu.memory_space<vmem>>, vector<1x256xf32>
    %4 = vector.broadcast %3 : vector<1x256xf32> to vector<8x256xf32>
    %5 = arith.addf %2, %4 : vector<8x256xf32>
    %c0_5 = arith.constant 0 : index
    %c0_6 = arith.constant 0 : index
    %6 = vector.load %arg4[%c0_5, %c0_6] : memref<8x256xf32, #tpu.memory_space<vmem>>, vector<8x256xf32>
    tpu.vector_store %arg4[%c0_5, %c0_6], %5 {strides = array<i32>} : memref<8x256xf32, #tpu.memory_space<vmem>>, vector<8x256xf32>,
    return
  }
  func.func @transform_0(%arg0: i32) -> (i32, i32) {
    %c0_i32 = arith.constant 0 : i32
    %c0_i32_0 = arith.constant 0 : i32
    return %arg0, %c0_i32 : i32, i32
  }
  func.func @transform_1(%arg0: i32) -> (i32, i32) {
    %c0_i32 = arith.constant 0 : i32
    %c0_i32_0 = arith.constant 0 : i32
    %c0_i32_1 = arith.constant 0 : i32
    return %c0_i32, %c0_i32_0 : i32, i32
  }
  func.func @transform_2(%arg0: i32) -> (i32, i32) {
    %c0_i32 = arith.constant 0 : i32
    %c0_i32_0 = arith.constant 0 : i32
    %c0_i32_1 = arith.constant 0 : i32
    return %c0_i32, %c0_i32_0 : i32, i32
  }
  func.func @transform_3(%arg0: i32) -> (i32, i32) {
    %c0_i32 = arith.constant 0 : i32
    %c0_i32_0 = arith.constant 0 : i32
    return %arg0, %c0_i32 : i32, i32
  }
}

</mosaic_0001>

<llo_original>
// kernel: tile.8
$region0: #{tile.8}
  #allocation0 [shape = 's32[1]{0}', space=sflag, size = 0x4, scoped, tag = 'scoped memory for tile.8']
  %s0 = inlined_call_operand.vmem [shape: f32[32], index: 0, kind: input, shape index: {}]
  %s1 = inlined_call_operand.vmem [shape: f32[8,32], index: 1, kind: output, shape index: {}]
  // Predicated region
  $region2: #{tile.8} parent=0 // pred_check
    _
  $region3: #{tile.8} parent=0 // pred_check_branch
    %3 = sbr.rel (0) target = $region5
  $region4: #{tile.8} parent=0 // pred_region
    _
  $region5: #{tile.8} parent=0 // pred_fallthru
    _
  %v4 = vld [vmem:[%s0] ss:$0 sm:$0xff]
  %5 = vst [vmem:[%s1] sm:$0xff] %v4

// kernel: tile.9
$region0: #{tile.9}
  %s0 = inlined_call_operand.vmem [shape: f32[8,32], index: 0, kind: input, shape index: {}]
  %s1 = inlined_call_operand.vmem [shape: f32[1,256], index: 1, kind: output, shape index: {}]
  $region1: #{tile.9} parent=0
    #allocation0 [shape = 'u8[8192]{0}', space=vmem, size = 0x2000, scoped, tag = 'scoped mem for output reshape']
    %s2 = smov 3
    %v3 = vld [vmem:[%s0] ss:$4 sm:%s2]
    %vm4 = vcmask 261120
    %5 = vst.msk [vmem:[#allocation0] ss:$8 sm:$0x3] %vm4, %v3
    %s6 = scalar_lea.vmem %s0, 3
    %s7 = smov 3
    %v8 = vld [vmem:[%s6] ss:$4 sm:%s7]
    %9 = vrot.lane.b32.xlu0 %v8, 96
    %v10 = vpop.permute.xlu0 %9
    %vm11 = vcmask 1048320
    %12 = vst.msk [vmem:[#allocation0] ss:$8 sm:$0x3] %vm11, %v10
    %s13 = scalar_lea.vmem %s0, 2
    %s14 = smov 3
    %v15 = vld [vmem:[%s13] ss:$4 sm:%s14]
    %16 = vrot.lane.b32.xlu0 %v15, 64
    %v17 = vpop.permute.xlu0 %16
    %vm18 = vcmask 785920
    %19 = vst.msk [vmem:[#allocation0] ss:$8 sm:$0x3] %vm18, %v17
    %s20 = scalar_lea.vmem %s0, 1
    %s21 = smov 3
    %v22 = vld [vmem:[%s20] ss:$4 sm:%s21]
    %23 = vrot.lane.b32.xlu0 %v22, 32
    %v24 = vpop.permute.xlu0 %23
    %vm25 = vcmask 523520
    %26 = vst.msk [vmem:[#allocation0] ss:$8 sm:$0x3] %vm25, %v24
    %s28 = sshllo.u32 0, 1
    %v30 = vld [vmem:[#allocation0] sm:%s28]
    %s31 = sshllo.u32 0, 1
    %32 = vst [vmem:[%s1] sm:%s31] %v30
    %s33 = scalar_lea.vmem [#allocation0], 8
    %v34 = vld [vmem:[%s33] sm:%s28]
    %s35 = sshllo.u32 0, 1
    %s36 = scalar_lea.vmem %s1, 1
    %37 = vst [vmem:[%s36] sm:%s35] %v34

// kernel: time_feature_embedding.1
$region0: #{time_feature_embedding.1}
  #allocation0 [shape = 'u32[]', space=smem, size = 0x4, offset = 0x4, fixed_abs, tag = 'smem constant byte address 0x4 - core index']
  #allocation1 [shape = 'u32[144,128]{1,0:T(1,128)}', space=vmem, size = 0x12000, scoped, tag = 'internal scratch']
  %s0 = inlined_call_operand.vmem [shape: f32[8,32], index: 0, kind: input, shape index: {}]
  %s1 = inlined_call_operand.vmem [shape: f32[32,256], index: 1, kind: input, shape index: {}]
  %s2 = inlined_call_operand.vmem [shape: f32[1,256], index: 2, kind: input, shape index: {}]
  %s3 = inlined_call_operand.vmem [shape: f32[8,256], index: 3, kind: output, shape index: {}]
  %s4 = sld [smem:[#allocation0]]
  $region22: #{time_feature_embedding.1} parent=0
    _
  %s6 = ssub.s32 1, %s4
  %s7 = scalar_select 0, %s6, %s4
  // Predicated region
  $region2: #{time_feature_embedding.1} parent=0 // pred_check
    _
  $region3: #{time_feature_embedding.1} parent=0 // pred_check_branch
    %9 = sbr.rel (0) target = $region5
  $region4: #{time_feature_embedding.1} parent=0 // pred_region
    _
  $region5: #{time_feature_embedding.1} parent=0 // pred_fallthru
    _
  // Predicated region
  $region6: #{time_feature_embedding.1} parent=0 // pred_check
    _
  $region7: #{time_feature_embedding.1} parent=0 // pred_check_branch
    %11 = sbr.rel (0) target = $region9
  $region8: #{time_feature_embedding.1} parent=0 // pred_region
    _
  $region9: #{time_feature_embedding.1} parent=0 // pred_fallthru
    _
  // Predicated region
  $region10: #{time_feature_embedding.1} parent=0 // pred_check
    _
  $region11: #{time_feature_embedding.1} parent=0 // pred_check_branch
    %13 = sbr.rel (0) target = $region13
  $region12: #{time_feature_embedding.1} parent=0 // pred_region
    _
  $region13: #{time_feature_embedding.1} parent=0 // pred_fallthru
    _
  %v14 = vld [vmem:[%s0] sm:$0xff]
  %v15 = vld [vmem:[%s1] sm:$0xff]
  %v16 = vld [vmem:[%s1 + $0x8] sm:$0xff]
  %v17 = vld [vmem:[%s1 + $0x10] sm:$0xff]
  %v18 = vld [vmem:[%s1 + $0x18] sm:$0xff]
  %v19 = vld [vmem:[%s1 + $0x20] sm:$0xff]
  %v20 = vld [vmem:[%s1 + $0x28] sm:$0xff]
  %v21 = vld [vmem:[%s1 + $0x30] sm:$0xff]
  %v22 = vld [vmem:[%s1 + $0x38] sm:$0xff]
  %v23 = vld [vmem:[%s2] sm:$0x3]
  %v25 = vlaneseq
  %v26 = vshrl.u32 %v25, 7
  %v27 = vsub.s32 0, %v26
  %v28 = vrot.slane %v23, %v27
  %v29 = vlaneseq
  %v30 = vshrl.u32 %v29, 7
  %v31 = vsub.s32 1, %v30
  %v32 = vrot.slane %v23, %v31
  %vm35 = vcmask 261120
  %v37 = vsel %vm35, %v14, 0
  %39 = vmatprep.subr.mxu0 %v16
  %40 = vmatpush1.msra.mxu0 %v15
  %41 = vmatprep.subr.mxu0 %v18
  %42 = vmatpush1.msra.mxu0 %v17
  %43 = vmatprep.subr.mxu0 %v20
  %44 = vmatpush1.msra.mxu0 %v19
  %45 = vmatprep.subr.mxu0 %v22
  %46 = vmatpush1.msra.mxu0 %v21
  %47 = vmatprep.subr.mxu0 0.0
  %48 = vmatpush1.msra.mxu0 0.0
  %49 = vmatprep.subr.mxu0 0.0
  %50 = vmatpush1.msra.mxu0 0.0
  %51 = vmatprep.subr.mxu0 0.0
  %52 = vmatpush1.msra.mxu0 0.0
  %53 = vmatprep.subr.mxu0 0.0
  %54 = vmatpush1.msra.mxu0 0.0
  %55 = vmatprep.subr.mxu0 0.0
  %56 = vmatpush1.msra.mxu0 0.0
  %57 = vmatprep.subr.mxu0 0.0
  %58 = vmatpush1.msra.mxu0 0.0
  %59 = vmatprep.subr.mxu0 0.0
  %60 = vmatpush1.msra.mxu0 0.0
  %61 = vmatprep.subr.mxu0 0.0
  %62 = vmatpush1.msra.mxu0 0.0
  %63 = vmatprep.subr.mxu0 0.0
  %64 = vmatpush1.msra.mxu0 0.0
  %65 = vmatprep.subr.mxu0 0.0
  %66 = vmatpush1.msra.mxu0 0.0
  %67 = vmatprep.subr.mxu0 0.0
  %68 = vmatpush1.msra.mxu0 0.0
  %69 = vmatprep.subr.mxu0 0.0
  %70 = vmatpush1.msra.mxu0 0.0
  %71 = vmatprep.subr.mxu0 0.0
  %72 = vmatpush1.msra.mxu0 0.0
  %73 = vmatprep.subr.mxu0 0.0
  %74 = vmatpush1.msra.mxu0 0.0
  %75 = vmatprep.subr.mxu0 0.0
  %76 = vmatpush1.msra.mxu0 0.0
  %77 = vmatprep.subr.mxu0 0.0
  %78 = vmatpush1.msra.mxu0 0.0
  %79 = vmatprep.subr.mxu0 0.0
  %80 = vmatpush1.msra.mxu0 0.0
  %81 = vmatprep.subr.mxu0 0.0
  %82 = vmatpush1.msra.mxu0 0.0
  %83 = vmatprep.subr.mxu0 0.0
  %84 = vmatpush1.msra.mxu0 0.0
  %85 = vmatprep.subr.mxu0 0.0
  %86 = vmatpush1.msra.mxu0 0.0
  %87 = vmatprep.subr.mxu0 0.0
  %88 = vmatpush1.msra.mxu0 0.0
  %89 = vmatprep.subr.mxu0 0.0
  %90 = vmatpush1.msra.mxu0 0.0
  %91 = vmatprep.subr.mxu0 0.0
  %92 = vmatpush1.msra.mxu0 0.0
  %93 = vmatprep.subr.mxu0 0.0
  %94 = vmatpush1.msra.mxu0 0.0
  %95 = vmatprep.subr.mxu0 0.0
  %96 = vmatpush1.msra.mxu0 0.0
  %97 = vmatprep.subr.mxu0 0.0
  %98 = vmatpush1.msra.mxu0 0.0
  %99 = vmatprep.subr.mxu0 0.0
  %100 = vmatpush1.msra.mxu0 0.0
  %101 = vmatprep.subr.mxu0 0.0
  %102 = vmatpush1.msra.mxu0 0.0
  %103 = vmatprep.mubr.f32.mxu0 0.0
  %104 = vmatmul.mubr.f32.gmra.mrb[0].mxu0 %v37
  %v105 = vpop.f32.mrb[0].mxu0
  %v106 = vadd.f32 %v28, %v105
  %v107 = vpop.f32.mrb[0].mxu0
  %v108 = vadd.f32 %v32, %v107
  %109 = vdwg.mxu0
  %110 = vst [vmem:[%s3] sm:$0xff] %v106
  %111 = vst [vmem:[%s3 + $0x8] sm:$0xff] %v108
  // Predicated region
  $region14: #{time_feature_embedding.1} parent=0 // pred_check
    _
  $region15: #{time_feature_embedding.1} parent=0 // pred_check_branch
    %113 = sbr.rel (0) target = $region17
  $region16: #{time_feature_embedding.1} parent=0 // pred_region
    _
  $region17: #{time_feature_embedding.1} parent=0 // pred_fallthru
    _
  // Predicated region
  $region18: #{time_feature_embedding.1} parent=0 // pred_check
    _
  $region19: #{time_feature_embedding.1} parent=0 // pred_check_branch
    %115 = sbr.rel (0) target = $region21
  $region20: #{time_feature_embedding.1} parent=0 // pred_region
    _
  $region21: #{time_feature_embedding.1} parent=0 // pred_fallthru
    _

</llo_original>
